<compile_context>
chip_gen: v7x
topology: tpu7x:2x2x1
jax: 0.10.0
libtpu: 0.0.40
codegen_flags: <defaults>
</compile_context>

<pallas_src>
import math

import jax
import jax.numpy as jnp
from jax.experimental import pallas as pl
from jax.experimental.pallas import tpu as pltpu

_SUBLANE = 8
_VMEM_BUDGET = 20 * 1024 * 1024   # cap on per-kernel tile buffers when choosing tb


def _round_up(n, m):
    return (n + m - 1) // m * m


def _vmem_footprint(tb, D, CS, C):
    """Conservative double-buffered VMEM footprint (superset of the three kernels)."""
    fixed = 2 * (D * CS * 2 + CS * C * 4)              # Wn (bf16) + G (f32)
    per_row = 2 * (D * 2 + CS * 4 + C * 4 + 16 * 4)    # x(bf16), logits, y_sel, stats/loss
    return fixed + tb * per_row


def _choose_batch_tiling(B, D, CS, C):
    """Pick (tb, Bp): batch tile (multiple of 8) and padded batch (multiple of tb).

    Preference: (1) fits VMEM budget, (2) >=2 grid steps so v7x's second TensorCore
    gets work and the pipeline has something to overlap, (3) minimal padding
    (HBM-bound kernel), (4) even step count, (5) fewer steps.
    """
    B8 = _round_up(max(B, 1), _SUBLANE)
    fixed = _vmem_footprint(0, D, CS, C)
    per_row = _vmem_footprint(1, D, CS, C) - fixed
    tb_max = (_VMEM_BUDGET - fixed) // max(per_row, 1)
    tb_max = max(_SUBLANE, min(1024, tb_max) // _SUBLANE * _SUBLANE)
    if B8 <= _SUBLANE:
        return _SUBLANE, B8                          # only one 8-row tile of real data
    best = None
    for tb in range(_SUBLANE, min(tb_max, B8 - _SUBLANE) + 1, _SUBLANE):
        Bp = _round_up(B8, tb)
        n = Bp // tb                                 # >= 2 because tb <= B8 - 8
        key = (Bp - B8, n % 2, n)                    # padding, even-steps, fewer steps
        if best is None or key < best[0]:
            best = (key, tb, Bp)
    return best[1], best[2]


def _compiler_params(vmem_bytes):
    # Footprint-derived scoped VMEM limit (+ headroom for Mosaic internal scratch),
    # capped to sit comfortably inside v7x's 64 MiB physical VMEM (v5e/v6e have 128 MiB).
    limit = int(min(56 << 20, max(16 << 20, vmem_bytes + (8 << 20))))
    return pltpu.CompilerParams(dimension_semantics=("parallel",),
                                vmem_limit_bytes=limit)


def _smem_scalar(s):
    return jnp.reshape(jnp.asarray(s, dtype=jnp.float32), (1,))


def _l2_normalize_rows(x):
    # F.normalize(x, p=2, dim=1): x / clamp(||x||, 1e-12) == x * rsqrt(max(sumsq, 1e-24))
    ss = jnp.sum(x * x, axis=1, keepdims=True)
    return x * jax.lax.rsqrt(jnp.maximum(ss, 1e-24))


def _l2_normalize_cols(w):
    # F.normalize(W, p=2, dim=0)
    ss = jnp.sum(w * w, axis=0, keepdims=True)
    return w * jax.lax.rsqrt(jnp.maximum(ss, 1e-24))


def _pad_rows(a, rows):
    if a.shape[0] == rows:
        return a
    return jnp.pad(a, ((0, rows - a.shape[0]),) + ((0, 0),) * (a.ndim - 1))


# ------------------------------ kernel bodies ------------------------------- #

def _scaled_softmax_group_ce(z, g, y_sel):
    """softmax(z) over the full C*S extent, subcluster-sum via `g` (class = col // S),
    then cross-entropy of the grouped probabilities (treated as logits) vs. the
    one-hot selector.  NOTE: only correct because the whole C*S extent lives in a
    single block (no online softmax needed); if CS is ever tiled this must change."""
    m = jnp.max(z, axis=1, keepdims=True)
    e = jnp.exp(z - m)
    p = e / jnp.sum(e, axis=1, keepdims=True)          # exact divide (kernel is mem-bound)
    out = jnp.dot(p, g, preferred_element_type=jnp.float32)       # (TB, C)
    mo = jnp.max(out, axis=1, keepdims=True)
    lse = mo + jnp.log(jnp.sum(jnp.exp(out - mo), axis=1, keepdims=True))
    sel = jnp.sum(y_sel * out, axis=1, keepdims=True)
    return lse - sel


def _train_logits_kernel(s_ref, x_ref, wn_ref, logits_ref, stats_ref):
    s = s_ref[0]
    # x arrives as bf16 (half the HBM read); normalize in f32, narrow back to bf16
    # only for the MXU operand (f32 accumulation).
    xf = x_ref[...].astype(jnp.float32)
    xb = _l2_normalize_rows(xf).astype(jnp.bfloat16)
    logits = jnp.dot(xb, wn_ref[...], preferred_element_type=jnp.float32)
    logits_ref[...] = logits
    # per-row stats for the adaptive-s update, packed into one (tb, 2) side output
    z = logits * s
    m = jnp.max(z, axis=1, keepdims=True)
    lse = m + jnp.log(jnp.sum(jnp.exp(z - m), axis=1, keepdims=True))
    stats_ref[...] = jnp.concatenate([m, lse], axis=1)


def _loss_kernel(s_ref, logits_ref, ysel_ref, g_ref, loss_ref):
    loss_ref[...] = _scaled_softmax_group_ce(logits_ref[...] * s_ref[0],
                                             g_ref[...], ysel_ref[...])


def _eval_fused_kernel(s_ref, x_ref, wn_ref, ysel_ref, g_ref, loss_ref):
    # eval mode: s is constant -> logits + softmax + CE fused, logits never hit HBM
    xf = x_ref[...].astype(jnp.float32)
    xb = _l2_normalize_rows(xf).astype(jnp.bfloat16)
    logits = jnp.dot(xb, wn_ref[...], preferred_element_type=jnp.float32)
    loss_ref[...] = _scaled_softmax_group_ce(logits * s_ref[0],
                                             g_ref[...], ysel_ref[...])


# ------------------------------ pallas_call glue ----------------------------- #

def _call_train_logits(s, x_pad, wn, tb, vmem_bytes):
    Bp, D = x_pad.shape
    CS = wn.shape[1]
    return pl.pallas_call(
        _train_logits_kernel,
        out_shape=(jax.ShapeDtypeStruct((Bp, CS), jnp.float32),
                   jax.ShapeDtypeStruct((Bp, 2), jnp.float32)),
        grid=(Bp // tb,),
        in_specs=[
            pl.BlockSpec(memory_space=pltpu.MemorySpace.SMEM),      # s (scalar)
            pl.BlockSpec((tb, D), lambda i: (i, 0)),                # x tile (bf16)
            pl.BlockSpec((D, CS), lambda i: (0, 0)),                # Wn (hoisted, bf16)
        ],
        out_specs=(
            pl.BlockSpec((tb, CS), lambda i: (i, 0)),               # logits tile
            pl.BlockSpec((tb, 2), lambda i: (i, 0)),                # [row max, row lse]
        ),
        compiler_params=_compiler_params(vmem_bytes),
    )(_smem_scalar(s), x_pad, wn)


def _call_loss(s, logits, ysel_pad, g, tb, vmem_bytes):
    Bp, CS = logits.shape
    C = ysel_pad.shape[1]
    return pl.pallas_call(
        _loss_kernel,
        out_shape=jax.ShapeDtypeStruct((Bp, 1), jnp.float32),
        grid=(Bp // tb,),
        in_specs=[
            pl.BlockSpec(memory_space=pltpu.MemorySpace.SMEM),
            pl.BlockSpec((tb, CS), lambda i: (i, 0)),
            pl.BlockSpec((tb, C), lambda i: (i, 0)),
            pl.BlockSpec((CS, C), lambda i: (0, 0)),
        ],
        out_specs=pl.BlockSpec((tb, 1), lambda i: (i, 0)),
        compiler_params=_compiler_params(vmem_bytes),
    )(_smem_scalar(s), logits, ysel_pad, g)


def _call_eval_fused(s, x_pad, wn, ysel_pad, g, tb, vmem_bytes):
    Bp, D = x_pad.shape
    CS = wn.shape[1]
    C = ysel_pad.shape[1]
    return pl.pallas_call(
        _eval_fused_kernel,
        out_shape=jax.ShapeDtypeStruct((Bp, 1), jnp.float32),
        grid=(Bp // tb,),
        in_specs=[
            pl.BlockSpec(memory_space=pltpu.MemorySpace.SMEM),
            pl.BlockSpec((tb, D), lambda i: (i, 0)),
            pl.BlockSpec((D, CS), lambda i: (0, 0)),
            pl.BlockSpec((tb, C), lambda i: (i, 0)),
            pl.BlockSpec((CS, C), lambda i: (0, 0)),
        ],
        out_specs=pl.BlockSpec((tb, 1), lambda i: (i, 0)),
        compiler_params=_compiler_params(vmem_bytes),
    )(_smem_scalar(s), x_pad, wn, ysel_pad, g)


# ------------------------------ Module wrapper ------------------------------- #

class SCAdaCosPallas:
    """Forward-pass equivalent of the PyTorch SCAdaCos module."""

    def __init__(self, n_classes=10, n_subclusters=1, input_shape=256, seed=0):
        self.n_classes = n_classes
        self.n_subclusters = n_subclusters
        CS = n_classes * n_subclusters
        self.s = jnp.float32(math.sqrt(2.0) * math.log(CS - 1.0))
        # xavier_uniform_ on W of shape (input_shape, CS)
        limit = math.sqrt(6.0 / (input_shape + CS))
        self.W = jax.random.uniform(jax.random.PRNGKey(seed), (input_shape, CS),
                                    dtype=jnp.float32, minval=-limit, maxval=limit)
        # grouping matrix for view(-1, C, S).sum(2): column j -> class j // S
        cls_of_col = jnp.arange(CS) // n_subclusters
        self.G = (cls_of_col[:, None] == jnp.arange(n_classes)[None, :]).astype(jnp.float32)

    def __call__(self, inputs, training=True):
        x, y1, y2 = inputs                      # y2 unused (matches torch module)
        B, D = x.shape
        C = self.n_classes
        S = self.n_subclusters
        CS = C * S

        tb, Bp = _choose_batch_tiling(B, D, CS, C)
        vmem_bytes = _vmem_footprint(tb, D, CS, C)

        # Hoisted out of the per-tile body: normalize W columns once (f32), then
        # narrow to bf16 for the MXU operand (also halves the W DMA traffic).
        wn = _l2_normalize_cols(self.W).astype(jnp.bfloat16)
        # cross-entropy target selector (keeps argmax semantics for non-one-hot y1)
        label = jnp.argmax(y1, axis=1)
        y_sel = jax.nn.one_hot(label, C, dtype=jnp.float32)

        x_pad = _pad_rows(x.astype(jnp.bfloat16), Bp)     # bf16 feed halves x HBM read
        ysel_pad = _pad_rows(y_sel, Bp)

        s = self.s
        if training:
            logits, stats = _call_train_logits(s, x_pad, wn, tb, vmem_bytes)
            rowmax = stats[:B, 0]
            rowlse = stats[:B, 1]
            # adaptive-s update: only (B,)-sized reductions + the quantile run in XLA
            gmax = jnp.max(rowmax)
            b_avg = jnp.mean(jnp.exp(rowlse - gmax))
            # theta glue: arccos only on the argmax(y1)-selected subcluster columns
            # (column j -> class j % C), i.e. B*S values instead of B*C*S.
            # TODO(synk): exact only for single-hot y1 (the module's intended labels);
            # multi-hot y1 would need the full (B, C*S) arccos pass of the torch code.
            idx = label[:, None] + jnp.arange(S, dtype=label.dtype)[None, :] * C
            cos_sel = jnp.take_along_axis(logits[:B], idx, axis=1)          # (B, S)
            theta_sel = jnp.arccos(jnp.clip(cos_sel, -1.0 + 1e-7, 1.0 - 1e-7))
            w_sel = jnp.take_along_axis(y1, label[:, None], axis=1)[:, 0]
            theta_class = (jnp.sum(theta_sel, axis=1) * w_sel
                           * jnp.count_nonzero(y1, axis=1).astype(jnp.float32))
            theta_med = jnp.quantile(theta_class, 0.5)       # torch.quantile(q=0.5)
            s = (gmax + jnp.log(b_avg)) / jnp.cos(
                jnp.minimum(jnp.float32(math.pi / 4.0), theta_med)) + 1e-7
            self.s = s   # NOTE: python-side buffer like the torch module; not jit-safe
            loss = _call_loss(s, logits, ysel_pad, self.G, tb, vmem_bytes)
        else:
            loss = _call_eval_fused(s, x_pad, wn, ysel_pad, self.G, tb, vmem_bytes)
        return loss[:B, 0]


# ------------------------------ reference (JAX) ------------------------------ #

def _reference(x, y1, W, s_init, n_classes, n_subclusters, training):
    """Pure-JAX reference mirroring the kernel's accepted quantization choice
    (bf16 x feed + bf16 MXU operands, f32 accumulation); all other math follows
    the torch module exactly."""
    xn = _l2_normalize_rows(x.astype(jnp.bfloat16).astype(jnp.float32)).astype(jnp.bfloat16)
    Wn = _l2_normalize_cols(W).astype(jnp.bfloat16)
    logits = jnp.dot(xn, Wn, preferred_element_type=jnp.float32)
    s = s_init
    if training:
        theta = jnp.arccos(jnp.clip(logits, -1.0 + 1e-7, 1.0 - 1e-7))
        max_s_logits = jnp.max(s * logits)
        B_avg = jnp.mean(jnp.sum(jnp.exp(s * logits - max_s_logits), axis=1))
        y1_rep = jnp.tile(y1, (1, n_subclusters))
        theta_class = (jnp.sum(y1_rep * theta, axis=1)
                       * jnp.count_nonzero(y1, axis=1).astype(jnp.float32))
        theta_med = jnp.quantile(theta_class, 0.5)
        s = (max_s_logits + jnp.log(B_avg)) / jnp.cos(
            jnp.minimum(jnp.float32(math.pi / 4.0), theta_med)) + 1e-7
    z = logits * s
    p = jax.nn.softmax(z, axis=1)
    out = p.reshape(-1, n_classes, n_subclusters).sum(axis=2)
    tgt = jnp.argmax(y1, axis=1)
    logp = jax.nn.log_softmax(out, axis=1)
    return -logp[jnp.arange(out.shape[0]), tgt]


# ----------------------------------- main ------------------------------------ #

if __name__ == "__main__":
    B, D = 8, 256
    n_classes, n_subclusters = 10, 2

    key = jax.random.PRNGKey(0)
    kx, ky = jax.random.split(key)
    x = jax.random.normal(kx, (B, D), dtype=jnp.float32)
    labels = jax.random.randint(ky, (B,), 0, n_classes)
    y1 = jax.nn.one_hot(labels, n_classes, dtype=jnp.float32)
    y2 = jnp.zeros((B, n_classes), dtype=jnp.float32)   # unused, as in torch module

    mod = SCAdaCosPallas(n_classes=n_classes, n_subclusters=n_subclusters,
                         input_shape=D, seed=0)
    s_init = mod.s

    # training path (nn.Module default); updates mod.s as a side effect
    loss_train = jax.block_until_ready(mod((x, y1, y2), training=True))
    ref_train = _reference(x, y1, mod.W, s_init, n_classes, n_subclusters, training=True)
    assert loss_train.shape == (B,)
    assert jnp.allclose(loss_train, ref_train, atol=1e-2, rtol=1e-2), (loss_train, ref_train)

    # eval path (single fused kernel), using the updated s
    s_eval = mod.s
    loss_eval = jax.block_until_ready(mod((x, y1, y2), training=False))
    ref_eval = _reference(x, y1, mod.W, s_eval, n_classes, n_subclusters, training=False)
    assert loss_eval.shape == (B,)
    assert jnp.allclose(loss_eval, ref_eval, atol=1e-2, rtol=1e-2), (loss_eval, ref_eval)

    print("KERNEL_OK")
</pallas_src>

<mosaic_0001>
module attributes {stable_mosaic.version = 11 : i64} {
  func.func @_train_logits_kernel(%arg0: i32, %arg1: memref<1xf32, #tpu.memory_space<smem>>, %arg2: memref<8x256xbf16, #tpu.memory_space<vmem>>, %arg3: memref<256x20xbf16, #tpu.memory_space<vmem>>, %arg4: memref<8x20xf32, #tpu.memory_space<vmem>>, %arg5: memref<8x2xf32, #tpu.memory_space<vmem>>) attributes {dimension_semantics = [#tpu.dimension_semantics<parallel>], iteration_bounds = array<i64: 1>, scalar_prefetch = 0 : i64, scratch_operands = 0 : i64, tpu.core_type = #tpu.core_type<tc>, window_params = [{transform_indices = @transform_0, window_bounds = array<i64: 1>}, {transform_indices = @transform_1, window_bounds = array<i64: 8, 256>}, {pipeline_mode = #tpu.pipeline_mode<synchronous>, transform_indices = @transform_2, window_bounds = array<i64: 256, 20>}, {transform_indices = @transform_3, window_bounds = array<i64: 8, 20>}, {transform_indices = @transform_4, window_bounds = array<i64: 8, 2>}]} {
    %c0 = arith.constant 0 : index
    %0 = memref.load %arg1[%c0] : memref<1xf32, #tpu.memory_space<smem>>
    %c0_0 = arith.constant 0 : index
    %c0_1 = arith.constant 0 : index
    %1 = vector.load %arg2[%c0_0, %c0_1] : memref<8x256xbf16, #tpu.memory_space<vmem>>, vector<8x256xbf16>
    %2 = arith.extf %1 : vector<8x256xbf16> to vector<8x256xf32>
    %3 = arith.mulf %2, %2 : vector<8x256xf32>
    %cst = arith.constant dense<0.000000e+00> : vector<8xf32>
    %4 = vector.multi_reduction <add>, %3, %cst [1] : vector<8x256xf32> to vector<8xf32>
    %5 = vector.shape_cast %4 : vector<8xf32> to vector<8x1xf32>
    %cst_2 = arith.constant 1.000000e-24 : f32
    %6 = vector.broadcast %cst_2 : f32 to vector<8x1xf32>
    %7 = arith.maximumf %5, %6 : vector<8x1xf32>
    %8 = math.rsqrt %7 : vector<8x1xf32>
    %9 = vector.broadcast %8 : vector<8x1xf32> to vector<8x256xf32>
    %10 = arith.mulf %2, %9 : vector<8x256xf32>
    %11 = arith.truncf %10 : vector<8x256xf32> to vector<8x256xbf16>
    %c0_3 = arith.constant 0 : index
    %c0_4 = arith.constant 0 : index
    %12 = vector.load %arg3[%c0_3, %c0_4] : memref<256x20xbf16, #tpu.memory_space<vmem>>, vector<256x20xbf16>
    %cst_5 = arith.constant dense<0.000000e+00> : vector<8x20xf32>
    %13 = tpu.matmul %11, %12, %cst_5 {dimension_numbers = #tpu.dot_dimension_numbers<[1], [0], [0], [1], [0, 0, 1, 1], [], []>} : vector<8x256xbf16>, vector<256x20xbf16>, vector<8x20xf32> -> vector<8x20xf32>
    %c0_6 = arith.constant 0 : index
    %c0_7 = arith.constant 0 : index
    %14 = vector.load %arg4[%c0_6, %c0_7] : memref<8x20xf32, #tpu.memory_space<vmem>>, vector<8x20xf32>
    tpu.vector_store %arg4[%c0_6, %c0_7], %13 {strides = array<i32>} : memref<8x20xf32, #tpu.memory_space<vmem>>, vector<8x20xf32>,
    %15 = vector.broadcast %0 : f32 to vector<8x20xf32>
    %16 = arith.mulf %13, %15 : vector<8x20xf32>
    %cst_8 = arith.constant dense<0xFF800000> : vector<8xf32>
    %17 = vector.multi_reduction <maximumf>, %16, %cst_8 [1] : vector<8x20xf32> to vector<8xf32>
    %18 = vector.shape_cast %17 : vector<8xf32> to vector<8x1xf32>
    %19 = vector.broadcast %18 : vector<8x1xf32> to vector<8x20xf32>
    %20 = arith.subf %16, %19 : vector<8x20xf32>
    %21 = math.exp %20 : vector<8x20xf32>
    %cst_9 = arith.constant dense<0.000000e+00> : vector<8xf32>
    %22 = vector.multi_reduction <add>, %21, %cst_9 [1] : vector<8x20xf32> to vector<8xf32>
    %23 = vector.shape_cast %22 : vector<8xf32> to vector<8x1xf32>
    %24 = math.log %23 : vector<8x1xf32>
    %25 = arith.addf %18, %24 : vector<8x1xf32>
    %26 = tpu.concatenate %18, %25 in 1 : vector<8x1xf32>, vector<8x1xf32> -> vector<8x2xf32>
    %c0_10 = arith.constant 0 : index
    %c0_11 = arith.constant 0 : index
    %27 = vector.load %arg5[%c0_10, %c0_11] : memref<8x2xf32, #tpu.memory_space<vmem>>, vector<8x2xf32>
    tpu.vector_store %arg5[%c0_10, %c0_11], %26 {strides = array<i32>} : memref<8x2xf32, #tpu.memory_space<vmem>>, vector<8x2xf32>,
    return
  }
  func.func @transform_0(%arg0: i32) -> i32 {
    %c0_i32 = arith.constant 0 : i32
    %c0_i32_0 = arith.constant 0 : i32
    return %c0_i32 : i32
  }
  func.func @transform_1(%arg0: i32) -> (i32, i32) {
    %c0_i32 = arith.constant 0 : i32
    %c0_i32_0 = arith.constant 0 : i32
    return %arg0, %c0_i32 : i32, i32
  }
  func.func @transform_2(%arg0: i32) -> (i32, i32) {
    %c0_i32 = arith.constant 0 : i32
    %c0_i32_0 = arith.constant 0 : i32
    %c0_i32_1 = arith.constant 0 : i32
    return %c0_i32, %c0_i32_0 : i32, i32
  }
  func.func @transform_3(%arg0: i32) -> (i32, i32) {
    %c0_i32 = arith.constant 0 : i32
    %c0_i32_0 = arith.constant 0 : i32
    return %arg0, %c0_i32 : i32, i32
  }
  func.func @transform_4(%arg0: i32) -> (i32, i32) {
    %c0_i32 = arith.constant 0 : i32
    %c0_i32_0 = arith.constant 0 : i32
    return %arg0, %c0_i32 : i32, i32
  }
}

</mosaic_0001>

<llo_original>
// kernel: tpu_custom_call.1
$region0: #{tpu_custom_call.1}
  #allocation0 [shape = 'u32[]', space=smem, size = 0x4, offset = 0x4, fixed_abs, tag = 'smem constant byte address 0x4 - core index']
  #allocation1 [shape = 'u32[144,128]{1,0:T(1,128)}', space=vmem, size = 0x12000, scoped, tag = 'internal scratch']
  #allocation2 [shape = 'f32[1]{0:T(128)S(6)}', space=smem, size = 0x200, scoped, tag = 'scoped memory for tpu_custom_call.1']
  %s0 = inlined_call_operand.<no memory space> [shape: f32[1], index: 0, kind: input, shape index: {}]
  %s1 = inlined_call_operand.vmem [shape: bf16[8,256], index: 1, kind: input, shape index: {}]
  %s2 = inlined_call_operand.vmem [shape: bf16[256,20], index: 2, kind: input, shape index: {}]
  %s3 = inlined_call_operand.hbm [shape: f32[8,20], index: 3, kind: output, shape index: {0}]
  %s4 = inlined_call_operand.vmem [shape: f32[8,2], index: 4, kind: output, shape index: {1}]
  %5 = xla_tuple %s3, %s4
  %s6 = sld [smem:[#allocation0]]
  $region30: #{tpu_custom_call.1} parent=0
    _
  %s8 = ssub.s32 1, %s6
  %s9 = scalar_select 0, %s8, %s6
  %10 = sst [smem:[#allocation2]] %s0
  $region1: #{tpu_custom_call.1} parent=0
    #allocation3 [shape = 'u8[4096]{0}', space=vmem, size = 0x1000, scoped, tag = 'output window, operand 0, single buffered']
    #allocation4 [shape = 's32[1]{0}', space=sflag, size = 0x4, scoped, tag = 'scoped memory for tpu_custom_call.1']
    %11 = vsyncpa [#allocation4], 0
    // Predicated region
    $region2: #{tpu_custom_call.1} parent=1 // pred_check
      _
    $region3: #{tpu_custom_call.1} parent=1 // pred_check_branch
      %13 = sbr.rel (0) target = $region5
    $region4: #{tpu_custom_call.1} parent=1 // pred_region
      _
    $region5: #{tpu_custom_call.1} parent=1 // pred_fallthru
      _
    // Predicated region
    $region6: #{tpu_custom_call.1} parent=1 // pred_check
      _
    $region7: #{tpu_custom_call.1} parent=1 // pred_check_branch
      %15 = sbr.rel (0) target = $region9
    $region8: #{tpu_custom_call.1} parent=1 // pred_region
      _
    $region9: #{tpu_custom_call.1} parent=1 // pred_fallthru
      _
    // Predicated region
    $region10: #{tpu_custom_call.1} parent=1 // pred_check
      _
    $region11: #{tpu_custom_call.1} parent=1 // pred_check_branch
      %17 = sbr.rel (0) target = $region13
    $region12: #{tpu_custom_call.1} parent=1 // pred_region
      _
    $region13: #{tpu_custom_call.1} parent=1 // pred_fallthru
      _
    %s19 = sld [smem:[#allocation2]]
    %v20 = vld [vmem:[%s1] sm:$0xff]
    %v21 = vunpack.c.l.bf16 %v20
    %v22 = vunpack.c.h.bf16 %v20
    %v23 = vmul.f32 %v21, %v21
    %v24 = vmul.f32 %v22, %v22
    %v25 = vadd.f32 %v23, %v24
    %26 = vadd.xlane.f32.xlu0 %v25
    %v27 = vpop.xlane.xlu0 %26
    %v28 = vmax.f32 %v27, 1e-24
    %v29 = vrsqrt.pop %v28
    %v30 = vmul.f32 %v21, %v29
    %v31 = vmul.f32 %v22, %v29
    %v32 = vpack.c.bf16 %v30, %v30
    %v33 = vpack.c.bf16 %v31, %v31
    %v34 = vld [vmem:[%s2] sm:$0xf]
    %v35 = vld [vmem:[%s2 + $0x4] sm:$0xf]
    %v36 = vld [vmem:[%s2 + $0x8] sm:$0xf]
    %v37 = vld [vmem:[%s2 + $0xc] sm:$0xf]
    %v38 = vld [vmem:[%s2 + $0x10] sm:$0xf]
    %v39 = vld [vmem:[%s2 + $0x14] sm:$0xf]
    %v40 = vld [vmem:[%s2 + $0x18] sm:$0xf]
    %v41 = vld [vmem:[%s2 + $0x1c] sm:$0xf]
    %v42 = vld [vmem:[%s2 + $0x20] sm:$0xf]
    %v43 = vld [vmem:[%s2 + $0x24] sm:$0xf]
    %v44 = vld [vmem:[%s2 + $0x28] sm:$0xf]
    %v45 = vld [vmem:[%s2 + $0x2c] sm:$0xf]
    %v46 = vld [vmem:[%s2 + $0x30] sm:$0xf]
    %v47 = vld [vmem:[%s2 + $0x34] sm:$0xf]
    %v48 = vld [vmem:[%s2 + $0x38] sm:$0xf]
    %v49 = vld [vmem:[%s2 + $0x3c] sm:$0xf]
    %v50 = vld [vmem:[%s2 + $0x40] sm:$0xf]
    %v51 = vld [vmem:[%s2 + $0x44] sm:$0xf]
    %v52 = vld [vmem:[%s2 + $0x48] sm:$0xf]
    %v53 = vld [vmem:[%s2 + $0x4c] sm:$0xf]
    %v54 = vld [vmem:[%s2 + $0x50] sm:$0xf]
    %v55 = vld [vmem:[%s2 + $0x54] sm:$0xf]
    %v56 = vld [vmem:[%s2 + $0x58] sm:$0xf]
    %v57 = vld [vmem:[%s2 + $0x5c] sm:$0xf]
    %v58 = vld [vmem:[%s2 + $0x60] sm:$0xf]
    %v59 = vld [vmem:[%s2 + $0x64] sm:$0xf]
    %v60 = vld [vmem:[%s2 + $0x68] sm:$0xf]
    %v61 = vld [vmem:[%s2 + $0x6c] sm:$0xf]
    %v62 = vld [vmem:[%s2 + $0x70] sm:$0xf]
    %v63 = vld [vmem:[%s2 + $0x74] sm:$0xf]
    %v64 = vld [vmem:[%s2 + $0x78] sm:$0xf]
    %v65 = vld [vmem:[%s2 + $0x7c] sm:$0xf]
    %v98 = vunpack.c.l.b16 %v34
    %v99 = vunpack.c.l.b16 %v35
    %v100 = vunpack.c.l.b16 %v36
    %v101 = vunpack.c.l.b16 %v37
    %v102 = vunpack.c.l.b16 %v38
    %v103 = vunpack.c.l.b16 %v39
    %v104 = vunpack.c.l.b16 %v40
    %v105 = vunpack.c.l.b16 %v41
    %v106 = vunpack.c.l.b16 %v42
    %v107 = vunpack.c.l.b16 %v43
    %v108 = vunpack.c.l.b16 %v44
    %v109 = vunpack.c.l.b16 %v45
    %v110 = vunpack.c.l.b16 %v46
    %v111 = vunpack.c.l.b16 %v47
    %v112 = vunpack.c.l.b16 %v48
    %v113 = vunpack.c.l.b16 %v49
    %v114 = vunpack.c.l.b16 %v50
    %v115 = vunpack.c.l.b16 %v51
    %v116 = vunpack.c.l.b16 %v52
    %v117 = vunpack.c.l.b16 %v53
    %v118 = vunpack.c.l.b16 %v54
    %v119 = vunpack.c.l.b16 %v55
    %v120 = vunpack.c.l.b16 %v56
    %v121 = vunpack.c.l.b16 %v57
    %v122 = vunpack.c.l.b16 %v58
    %v123 = vunpack.c.l.b16 %v59
    %v124 = vunpack.c.l.b16 %v60
    %v125 = vunpack.c.l.b16 %v61
    %v126 = vunpack.c.l.b16 %v62
    %v127 = vunpack.c.l.b16 %v63
    %v128 = vunpack.c.l.b16 %v64
    %v129 = vunpack.c.l.b16 %v65
    %v130 = vpack.c.b16 %v99, %v98
    %v131 = vpack.c.b16 %v101, %v100
    %v132 = vpack.c.b16 %v103, %v102
    %v133 = vpack.c.b16 %v105, %v104
    %v134 = vpack.c.b16 %v107, %v106
    %v135 = vpack.c.b16 %v109, %v108
    %v136 = vpack.c.b16 %v111, %v110
    %v137 = vpack.c.b16 %v113, %v112
    %v138 = vpack.c.b16 %v115, %v114
    %v139 = vpack.c.b16 %v117, %v116
    %v140 = vpack.c.b16 %v119, %v118
    %v141 = vpack.c.b16 %v121, %v120
    %v142 = vpack.c.b16 %v123, %v122
    %v143 = vpack.c.b16 %v125, %v124
    %v144 = vpack.c.b16 %v127, %v126
    %v145 = vpack.c.b16 %v129, %v128
    %162 = vmatprep.subr.bf16.mxu0 0
    %163 = vmatpush1.bf16.msra.mxu0 %v130
    %164 = vmatprep.subr.bf16.mxu0 0
    %165 = vmatpush1.bf16.msra.mxu0 %v131
    %166 = vmatprep.subr.bf16.mxu0 0
    %167 = vmatpush1.bf16.msra.mxu0 %v132
    %168 = vmatprep.subr.bf16.mxu0 0
    %169 = vmatpush1.bf16.msra.mxu0 %v133
    %170 = vmatprep.subr.bf16.mxu0 0
    %171 = vmatpush1.bf16.msra.mxu0 %v134
    %172 = vmatprep.subr.bf16.mxu0 0
    %173 = vmatpush1.bf16.msra.mxu0 %v135
    %174 = vmatprep.subr.bf16.mxu0 0
    %175 = vmatpush1.bf16.msra.mxu0 %v136
    %176 = vmatprep.subr.bf16.mxu0 0
    %177 = vmatpush1.bf16.msra.mxu0 %v137
    %178 = vmatprep.subr.bf16.mxu0 0
    %179 = vmatpush1.bf16.msra.mxu0 %v138
    %180 = vmatprep.subr.bf16.mxu0 0
    %181 = vmatpush1.bf16.msra.mxu0 %v139
    %182 = vmatprep.subr.bf16.mxu0 0
    %183 = vmatpush1.bf16.msra.mxu0 %v140
    %184 = vmatprep.subr.bf16.mxu0 0
    %185 = vmatpush1.bf16.msra.mxu0 %v141
    %186 = vmatprep.subr.bf16.mxu0 0
    %187 = vmatpush1.bf16.msra.mxu0 %v142
    %188 = vmatprep.subr.bf16.mxu0 0
    %189 = vmatpush1.bf16.msra.mxu0 %v143
    %190 = vmatprep.subr.bf16.mxu0 0
    %191 = vmatpush1.bf16.msra.mxu0 %v144
    %192 = vmatprep.subr.bf16.mxu0 0
    %193 = vmatpush1.bf16.msra.mxu0 %v145
    %194 = vmatprep.mubr.bf16.mxu0 %v33
    %195 = vmatmul.mubr.bf16.gmra.mrb[0].mxu0 %v32
    %v196 = vpop.f32.mrb[0].mxu0
    %v197 = vadd.f32 0.0, %v196
    %v198 = vpop.f32.mrb[0].mxu0
    %v199 = vpop.f32.mrb[0].mxu0
    %v200 = vpop.f32.mrb[0].mxu0
    %201 = vdwg.mxu0
    %vm202 = vcmask 162816
    %203 = vst.msk [vmem:[#allocation3] sm:$0xff] %vm202, %v197
    %v204 = vstv %s19
    %v205 = vmul.f32 %v197, %v204
    %v206 = vsel %vm202, %v205, -inf
    %207 = vmax.xlane.f32.xlu0 %v206
    %v208 = vpop.xlane.xlu0 %207
    %v209 = vsub.f32 %v205, %v208
    %v210 = vmul.f32 %v209, 1.442695
    %v211 = vpow.pop %v210
    %v212 = vsel %vm202, %v211, 0.0
    %213 = vadd.xlane.f32.xlu0 %v212
    %v214 = vpop.xlane.xlu0 %213
    %v215 = vlog2.pop %v214
    %v216 = vmul.f32 %v215, 0.6931472
    %v217 = vadd.f32 %v208, %v216
    %vm218 = vcmask 7168
    %v219 = vsel %vm218, %v208, %v217
    %vm220 = vcmask 15360
    %221 = vst.msk [vmem:[%s4] sm:$0xff] %vm220, %v219
    // Predicated region
    $region14: #{tpu_custom_call.1} parent=1 // pred_check
      _
    $region15: #{tpu_custom_call.1} parent=1 // pred_check_branch
      %223 = sbr.rel (0) target = $region17
    $region16: #{tpu_custom_call.1} parent=1 // pred_region
      %s225 = ssub.s32 128, 128
      %226 = vsyncadd [#allocation4], %s225
      %s228 = sshll.u32 [#allocation3], 4
      %s229 = int_to_ptr.vmem [resolvable:$true] %s228
      %231 = dma.vmem_to_hbm [thread:$0]  %s229, 128, %s3, [#allocation4]
    $region17: #{tpu_custom_call.1} parent=1 // pred_fallthru
      _
    // Predicated region
    $region18: #{tpu_custom_call.1} parent=1 // pred_check
      _
    $region19: #{tpu_custom_call.1} parent=1 // pred_check_branch
      %233 = sbr.rel (0) target = $region21
    $region20: #{tpu_custom_call.1} parent=1 // pred_region
      _
    $region21: #{tpu_custom_call.1} parent=1 // pred_fallthru
      _
    // Predicated region
    $region22: #{tpu_custom_call.1} parent=1 // pred_check
      _
    $region23: #{tpu_custom_call.1} parent=1 // pred_check_branch
      %235 = sbr.rel (0) target = $region25
    $region24: #{tpu_custom_call.1} parent=1 // pred_region
      %236 = dma.done [#allocation4], 128
    $region25: #{tpu_custom_call.1} parent=1 // pred_fallthru
      _
    // Predicated region
    $region26: #{tpu_custom_call.1} parent=1 // pred_check
      _
    $region27: #{tpu_custom_call.1} parent=1 // pred_check_branch
      %238 = sbr.rel (0) target = $region29
    $region28: #{tpu_custom_call.1} parent=1 // pred_region
      _
    $region29: #{tpu_custom_call.1} parent=1 // pred_fallthru
      _
    %239 = vsyncpa [#allocation4], 1

</llo_original>
